<compile_context>
chip_gen: v5e
topology: v5e:2x2
jax: 0.10.0
libtpu: 0.0.40
codegen_flags: <defaults>
</compile_context>

<pallas_src>
import functools

import jax
import jax.numpy as jnp
from jax.experimental import pallas as pl
from jax.experimental.pallas import tpu as pltpu


def _round_up(x, m):
    return -(-x // m) * m


def _contrastive_loss_kernel(im_ref, s_ref, out_ref, im_sq_ref, s_sq_ref, *,
                             margin, measure, max_violation, batch, tm,
                             single_tile):
    bp = im_ref.shape[0]
    i = pl.program_id(0)
    dims = (((1,), (1,)), ((), ()))      # contract dim 1 with dim 1 (no rhs copy)

    if single_tile:
        row_off = 0
        im_t = im_ref[...]               # (bp, Dp), native dtype -> MXU directly
        s_t = s_ref[...]
    else:
        row_off = pl.multiple_of(i * tm, tm)
        im_t = im_ref[pl.ds(row_off, tm), :]   # (tm, Dp) rows of this strip
        s_t = s_ref[pl.ds(row_off, tm), :]

    # gram_a[r, c] = <im_{row_off+r}, s_c>  -> rows of `scores`
    gram_a = jax.lax.dot_general(im_t, s_ref[...], dims,
                                 preferred_element_type=jnp.float32)   # (tm, bp)

    if measure == "dot":
        scores_row = gram_a
        if single_tile:
            scoresT_row = jnp.transpose(scores_row)
        else:
            # gram_b[r, c] = <s_{row_off+r}, im_c> -> rows of `scores.T`
            scoresT_row = jax.lax.dot_general(s_t, im_ref[...], dims,
                                              preferred_element_type=jnp.float32)
    elif measure == "l2":
        im_t32 = im_t.astype(jnp.float32)
        s_t32 = s_t.astype(jnp.float32)
        im_sq_tile = jnp.sum(im_t32 * im_t32, axis=1, keepdims=True)   # (tm, 1)
        s_sq_tile = jnp.sum(s_t32 * s_t32, axis=1, keepdims=True)      # (tm, 1)
        if single_tile:
            scores_row = jnp.maximum(
                im_sq_tile + jnp.transpose(s_sq_tile) - 2.0 * gram_a, 0.0)
            scoresT_row = jnp.transpose(scores_row)
        else:
            # Column norms computed once (grid step 0) into persistent scratches.
            @pl.when(i == 0)
            def _fill_norms():
                im32 = im_ref[...].astype(jnp.float32)
                s32 = s_ref[...].astype(jnp.float32)
                im_sq_ref[...] = jnp.transpose(
                    jnp.sum(im32 * im32, axis=1, keepdims=True))        # (1, bp)
                s_sq_ref[...] = jnp.transpose(
                    jnp.sum(s32 * s32, axis=1, keepdims=True))          # (1, bp)

            gram_b = jax.lax.dot_general(s_t, im_ref[...], dims,
                                         preferred_element_type=jnp.float32)
            scores_row = jnp.maximum(
                im_sq_tile + s_sq_ref[...] - 2.0 * gram_a, 0.0)
            scoresT_row = jnp.maximum(
                s_sq_tile + im_sq_ref[...] - 2.0 * gram_b, 0.0)
    else:
        raise ValueError("measure must be 'dot' or 'l2'")

    # Diagonal of `scores` for the rows of this strip, extracted from the strip
    # itself so the equality mask has exactly the PyTorch semantics.
    row = jax.lax.broadcasted_iota(jnp.int32, (tm, bp), 0)
    col = jax.lax.broadcasted_iota(jnp.int32, (tm, bp), 1)
    g_row = row + row_off
    eye = col == g_row
    diag_col = jnp.sum(jnp.where(eye, scores_row, 0.0),
                       axis=1, keepdims=True)                           # (tm, 1)

    # mask1[r, c] = (scores[r, c] == diag[r]); the same mask zeroes both
    # cost_s rows and cost_im columns (handled in transposed coordinates).
    zero_mask = scores_row == diag_col
    if batch != bp:
        zero_mask = zero_mask | (g_row >= batch) | (col >= batch)

    cost_s = jnp.where(zero_mask, 0.0,
                       jnp.maximum(margin + scores_row - diag_col, 0.0))
    cost_imT = jnp.where(zero_mask, 0.0,
                         jnp.maximum(margin + scoresT_row - diag_col, 0.0))

    if max_violation:
        # cost_s.max(1) and cost_im.max(0) (== row-max of cost_im.T); costs are
        # >= 0 so padded zeros never change the max.
        cost_s = jnp.max(cost_s, axis=1, keepdims=True)
        cost_imT = jnp.max(cost_imT, axis=1, keepdims=True)

    partial = jnp.sum(cost_s) + jnp.sum(cost_imT)

    @pl.when(i == 0)
    def _init():
        out_ref[...] = jnp.zeros_like(out_ref)

    out_ref[...] = out_ref[...] + partial


def contrastive_loss(im, s, *, margin=1.0, measure="dot", max_violation=False,
                     block_rows=None):
    """Pallas implementation of ContrastiveLoss.forward(im, s) -> scalar."""
    assert im.ndim == 2 and s.ndim == 2
    assert im.shape == s.shape, "ContrastiveLoss expects matching (B, D) inputs"
    if measure not in ("dot", "l2"):
        raise ValueError("measure must be 'dot' or 'l2'")
    B, D = im.shape

    Dp = _round_up(max(D, 1), 128)
    if block_rows is None:
        # Single lane-dense tile for moderate batches; 128-row strips otherwise.
        block_rows = _round_up(max(B, 1), 128) if B <= 512 else 128
    assert block_rows % 8 == 0
    Bp = _round_up(max(B, 1), block_rows)
    num_tiles = Bp // block_rows

    if (Bp, Dp) != (B, D):
        im = jnp.pad(im, ((0, Bp - B), (0, Dp - D)))
        s = jnp.pad(s, ((0, Bp - B), (0, Dp - D)))

    kernel = functools.partial(
        _contrastive_loss_kernel,
        margin=float(margin),
        measure=measure,
        max_violation=bool(max_violation),
        batch=B,
        tm=block_rows,
        single_tile=(num_tiles == 1),
    )

    # Size scoped VMEM: resident inputs + a handful of live (tm, Bp) f32 strips
    # + the (1, Bp) norm scratches, clamped to a range safe on v5e/v6e/v7x.
    itemsize = jnp.dtype(im.dtype).itemsize
    needed = (2 * Bp * Dp * itemsize + 10 * block_rows * Bp * 4
              + 2 * Bp * 4 + (2 << 20))
    vmem_limit = int(min(max(needed, 16 << 20), 56 << 20))

    out = pl.pallas_call(
        kernel,
        out_shape=jax.ShapeDtypeStruct((1, 1), jnp.float32),
        grid=(num_tiles,),
        in_specs=[
            pl.BlockSpec(memory_space=pltpu.MemorySpace.VMEM),
            pl.BlockSpec(memory_space=pltpu.MemorySpace.VMEM),
        ],
        out_specs=pl.BlockSpec(memory_space=pltpu.MemorySpace.VMEM),
        scratch_shapes=[
            pltpu.VMEM((1, Bp), jnp.float32),   # ||im||^2 as a lane row
            pltpu.VMEM((1, Bp), jnp.float32),   # ||s||^2  as a lane row
        ],
        compiler_params=pltpu.CompilerParams(
            dimension_semantics=("arbitrary",),
            vmem_limit_bytes=vmem_limit),
    )(im, s)
    return out[0, 0]


def _reference(im, s, *, margin=1.0, measure="dot", max_violation=False):
    """Pure-JAX reference replicating the PyTorch forward, for sanity check."""
    im = im.astype(jnp.float32)
    s = s.astype(jnp.float32)
    if measure == "dot":
        scores = im @ s.T
    else:
        diff = im[:, None, :] - s[None, :, :]
        scores = jnp.sum(diff * diff, axis=-1)
    diag = jnp.diag(scores)[:, None]
    d1 = jnp.broadcast_to(diag, scores.shape)
    d2 = jnp.broadcast_to(diag.T, scores.shape)
    cost_s = jnp.maximum(margin + scores - d1, 0.0)
    cost_im = jnp.maximum(margin + scores - d2, 0.0)
    mask1 = scores == d1
    mask2 = mask1.T
    cost_s = jnp.where(mask1, 0.0, cost_s)
    cost_im = jnp.where(mask2, 0.0, cost_im)
    if max_violation:
        cost_s = jnp.max(cost_s, axis=1)
        cost_im = jnp.max(cost_im, axis=0)
    return jnp.sum(cost_s) + jnp.sum(cost_im)


if __name__ == "__main__":
    key = jax.random.PRNGKey(0)
    k_im, k_s = jax.random.split(key)

    # Primary small config (exercises the single-tile fast path).
    B, D = 8, 32
    im = jax.random.normal(k_im, (B, D), dtype=jnp.float32)
    s = jax.random.normal(k_s, (B, D), dtype=jnp.float32)
    for measure in ("dot", "l2"):
        for max_violation in (False, True):
            loss = contrastive_loss(im, s, margin=1.0, measure=measure,
                                    max_violation=max_violation)
            jax.block_until_ready(loss)
            ref = _reference(im, s, margin=1.0, measure=measure,
                             max_violation=max_violation)
            assert jnp.allclose(loss, ref, rtol=2e-4, atol=1e-2), (
                "single-tile", measure, max_violation, loss, ref)

    # Exercise the row-tiled multi-step-grid path at small size (B=41 padded
    # to 48, three 16-row strips).
    B2, D2 = 41, 40
    im2 = jax.random.normal(jax.random.PRNGKey(1), (B2, D2), dtype=jnp.float32)
    s2 = jax.random.normal(jax.random.PRNGKey(2), (B2, D2), dtype=jnp.float32)
    for measure in ("dot", "l2"):
        for max_violation in (False, True):
            loss = contrastive_loss(im2, s2, margin=1.0, measure=measure,
                                    max_violation=max_violation, block_rows=16)
            jax.block_until_ready(loss)
            ref = _reference(im2, s2, margin=1.0, measure=measure,
                             max_violation=max_violation)
            assert jnp.allclose(loss, ref, rtol=2e-4, atol=1e-2), (
                "tiled", measure, max_violation, loss, ref)

    print("KERNEL_OK")
</pallas_src>

<mosaic_0001>
module attributes {stable_mosaic.version = 11 : i64} {
  func.func @_contrastive_loss_kernel(%arg0: i32, %arg1: memref<128x128xf32, #tpu.memory_space<vmem>>, %arg2: memref<128x128xf32, #tpu.memory_space<vmem>>, %arg3: memref<1x1xf32, #tpu.memory_space<vmem>>, %arg4: memref<1x128xf32, #tpu.memory_space<vmem>>, %arg5: memref<1x128xf32, #tpu.memory_space<vmem>>) attributes {dimension_semantics = [#tpu.dimension_semantics<arbitrary>], iteration_bounds = array<i64: 1>, scalar_prefetch = 0 : i64, scratch_operands = 2 : i64, tpu.core_type = #tpu.core_type<tc>, window_params = [{pipeline_mode = #tpu.pipeline_mode<synchronous>, transform_indices = @transform_0, window_bounds = array<i64: 128, 128>}, {pipeline_mode = #tpu.pipeline_mode<synchronous>, transform_indices = @transform_1, window_bounds = array<i64: 128, 128>}, {pipeline_mode = #tpu.pipeline_mode<synchronous>, transform_indices = @transform_2, window_bounds = array<i64: 1, 1>}]} {
    %c0 = arith.constant 0 : index
    %c0_0 = arith.constant 0 : index
    %0 = vector.load %arg1[%c0, %c0_0] : memref<128x128xf32, #tpu.memory_space<vmem>>, vector<128x128xf32>
    %c0_1 = arith.constant 0 : index
    %c0_2 = arith.constant 0 : index
    %1 = vector.load %arg2[%c0_1, %c0_2] : memref<128x128xf32, #tpu.memory_space<vmem>>, vector<128x128xf32>
    %cst = arith.constant dense<0.000000e+00> : vector<128x128xf32>
    %2 = tpu.matmul %0, %1, %cst {dimension_numbers = #tpu.dot_dimension_numbers<[1], [1], [0], [0], [0, 0, 1, 0], [], []>} : vector<128x128xf32>, vector<128x128xf32>, vector<128x128xf32> -> vector<128x128xf32>
    %3 = tpu.transpose %2, [1, 0] : vector<128x128xf32> -> vector<128x128xf32>
    %4 = tpu.iota {dimensions = array<i32: 0>} : vector<128x128xi32>
    %5 = tpu.iota {dimensions = array<i32: 1>} : vector<128x128xi32>
    %c0_i32 = arith.constant 0 : i32
    %6 = vector.broadcast %c0_i32 : i32 to vector<128x128xi32>
    %7 = arith.addi %4, %6 : vector<128x128xi32>
    %8 = arith.cmpi eq, %5, %7 : vector<128x128xi32>
    %cst_3 = arith.constant 0.000000e+00 : f32
    %9 = vector.broadcast %cst_3 : f32 to vector<128x128xf32>
    %10 = arith.select %8, %2, %9 : vector<128x128xi1>, vector<128x128xf32>
    %cst_4 = arith.constant dense<0.000000e+00> : vector<128xf32>
    %11 = vector.multi_reduction <add>, %10, %cst_4 [1] : vector<128x128xf32> to vector<128xf32>
    %12 = vector.shape_cast %11 : vector<128xf32> to vector<128x1xf32>
    %13 = vector.broadcast %12 : vector<128x1xf32> to vector<128x128xf32>
    %14 = arith.cmpf oeq, %2, %13 : vector<128x128xf32>
    %c8_i32 = arith.constant 8 : i32
    %15 = vector.broadcast %c8_i32 : i32 to vector<128x128xi32>
    %16 = arith.cmpi sge, %7, %15 : vector<128x128xi32>
    %17 = arith.ori %14, %16 : vector<128x128xi1>
    %c8_i32_5 = arith.constant 8 : i32
    %18 = vector.broadcast %c8_i32_5 : i32 to vector<128x128xi32>
    %19 = arith.cmpi sge, %5, %18 : vector<128x128xi32>
    %20 = arith.ori %17, %19 : vector<128x128xi1>
    %cst_6 = arith.constant 1.000000e+00 : f32
    %21 = vector.broadcast %cst_6 : f32 to vector<128x128xf32>
    %22 = arith.addf %21, %2 : vector<128x128xf32>
    %23 = vector.broadcast %12 : vector<128x1xf32> to vector<128x128xf32>
    %24 = arith.subf %22, %23 : vector<128x128xf32>
    %cst_7 = arith.constant 0.000000e+00 : f32
    %25 = vector.broadcast %cst_7 : f32 to vector<128x128xf32>
    %26 = arith.maximumf %24, %25 : vector<128x128xf32>
    %cst_8 = arith.constant 0.000000e+00 : f32
    %27 = vector.broadcast %cst_8 : f32 to vector<128x128xf32>
    %28 = arith.select %20, %27, %26 : vector<128x128xi1>, vector<128x128xf32>
    %cst_9 = arith.constant 1.000000e+00 : f32
    %29 = vector.broadcast %cst_9 : f32 to vector<128x128xf32>
    %30 = arith.addf %29, %3 : vector<128x128xf32>
    %31 = vector.broadcast %12 : vector<128x1xf32> to vector<128x128xf32>
    %32 = arith.subf %30, %31 : vector<128x128xf32>
    %cst_10 = arith.constant 0.000000e+00 : f32
    %33 = vector.broadcast %cst_10 : f32 to vector<128x128xf32>
    %34 = arith.maximumf %32, %33 : vector<128x128xf32>
    %cst_11 = arith.constant 0.000000e+00 : f32
    %35 = vector.broadcast %cst_11 : f32 to vector<128x128xf32>
    %36 = arith.select %20, %35, %34 : vector<128x128xi1>, vector<128x128xf32>
    %37 = vector.shape_cast %28 : vector<128x128xf32> to vector<1x128x128xf32>
    %cst_12 = arith.constant dense<0.000000e+00> : vector<1xf32>
    %38 = vector.multi_reduction <add>, %37, %cst_12 [1, 2] : vector<1x128x128xf32> to vector<1xf32>
    %39 = vector.shape_cast %38 : vector<1xf32> to vector<1x1x1xf32>
    %40 = vector.extract %39[0, 0, 0] : f32 from vector<1x1x1xf32>
    %41 = vector.shape_cast %36 : vector<128x128xf32> to vector<1x128x128xf32>
    %cst_13 = arith.constant dense<0.000000e+00> : vector<1xf32>
    %42 = vector.multi_reduction <add>, %41, %cst_13 [1, 2] : vector<1x128x128xf32> to vector<1xf32>
    %43 = vector.shape_cast %42 : vector<1xf32> to vector<1x1x1xf32>
    %44 = vector.extract %43[0, 0, 0] : f32 from vector<1x1x1xf32>
    %45 = arith.addf %40, %44 : f32
    %c0_i32_14 = arith.constant 0 : i32
    %46 = arith.cmpi eq, %arg0, %c0_i32_14 : i32
    %47 = arith.extui %46 : i1 to i32
    %c0_i32_15 = arith.constant 0 : i32
    %48 = arith.cmpi ne, %47, %c0_i32_15 : i32
    scf.if %48 {
      %cst_20 = arith.constant 0.000000e+00 : f32
      %53 = vector.broadcast %cst_20 : f32 to vector<1x1xf32>
      %c0_21 = arith.constant 0 : index
      %c0_22 = arith.constant 0 : index
      %54 = vector.load %arg3[%c0_21, %c0_22] : memref<1x1xf32, #tpu.memory_space<vmem>>, vector<1x1xf32>
      tpu.vector_store %arg3[%c0_21, %c0_22], %53 {strides = array<i32>} : memref<1x1xf32, #tpu.memory_space<vmem>>, vector<1x1xf32>,
    } else {
    }
    %c0_16 = arith.constant 0 : index
    %c0_17 = arith.constant 0 : index
    %49 = vector.load %arg3[%c0_16, %c0_17] : memref<1x1xf32, #tpu.memory_space<vmem>>, vector<1x1xf32>
    %50 = vector.broadcast %45 : f32 to vector<1x1xf32>
    %51 = arith.addf %49, %50 : vector<1x1xf32>
    %c0_18 = arith.constant 0 : index
    %c0_19 = arith.constant 0 : index
    %52 = vector.load %arg3[%c0_18, %c0_19] : memref<1x1xf32, #tpu.memory_space<vmem>>, vector<1x1xf32>
    tpu.vector_store %arg3[%c0_18, %c0_19], %51 {strides = array<i32>} : memref<1x1xf32, #tpu.memory_space<vmem>>, vector<1x1xf32>,
    return
  }
  func.func @transform_0(%arg0: i32) -> (i32, i32) {
    %c0_i32 = arith.constant 0 : i32
    %c0_i32_0 = arith.constant 0 : i32
    %c0_i32_1 = arith.constant 0 : i32
    return %c0_i32, %c0_i32_0 : i32, i32
  }
  func.func @transform_1(%arg0: i32) -> (i32, i32) {
    %c0_i32 = arith.constant 0 : i32
    %c0_i32_0 = arith.constant 0 : i32
    %c0_i32_1 = arith.constant 0 : i32
    return %c0_i32, %c0_i32_0 : i32, i32
  }
  func.func @transform_2(%arg0: i32) -> (i32, i32) {
    %c0_i32 = arith.constant 0 : i32
    %c0_i32_0 = arith.constant 0 : i32
    %c0_i32_1 = arith.constant 0 : i32
    return %c0_i32, %c0_i32_0 : i32, i32
  }
}

</mosaic_0001>

<llo_original>
// kernel: tpu_custom_call.1
$region0: #{tpu_custom_call.1}
  #allocation0 [shape = 'u32[]', space=smem, size = 0x4, offset = 0x4, fixed_abs, tag = 'smem constant byte address 0x4 - core index']
  #allocation1 [shape = 'u32[72,128]{1,0:T(1,128)}', space=vmem, size = 0x9000, scoped, tag = 'internal scratch']
  #allocation2 [shape = 'f32[1,128]{1,0:T(1,128)}', space=vmem, size = 0x200, scoped, tag = 'scratch operand']
  #allocation3 [shape = 'f32[1,128]{1,0:T(1,128)}', space=vmem, size = 0x200, scoped, tag = 'scratch operand']
  %s0 = inlined_call_operand.hbm [shape: f32[128,128], index: 0, kind: input, shape index: {}]
  %s1 = inlined_call_operand.hbm [shape: f32[128,128], index: 1, kind: input, shape index: {}]
  %s2 = inlined_call_operand.hbm [shape: f32[1,1], index: 2, kind: output, shape index: {}]
  %s3 = sld [smem:[#allocation0]]
  $region30: #{tpu_custom_call.1} parent=0
    _
  %s5 = ssub.s32 1, %s3
  %s6 = scalar_select 0, %s5, %s3
  $region1: #{tpu_custom_call.1} parent=0
    #allocation4 [shape = 'u8[65536]{0}', space=vmem, size = 0x10000, scoped, tag = 'input window, operand 0, single buffered']
    #allocation5 [shape = 's32[1]{0}', space=sflag, size = 0x4, scoped, tag = 'scoped memory for tpu_custom_call.1']
    #allocation6 [shape = 's32[1]{0}', space=sflag, size = 0x4, scoped, tag = 'scoped memory for tpu_custom_call.1']
    #allocation7 [shape = 'u8[65536]{0}', space=vmem, size = 0x10000, scoped, tag = 'input window, operand 1, single buffered']
    #allocation8 [shape = 's32[1]{0}', space=sflag, size = 0x4, scoped, tag = 'scoped memory for tpu_custom_call.1']
    #allocation9 [shape = 'u8[512]{0}', space=vmem, size = 0x400, scoped, tag = 'output window, operand 0, single buffered']
    %7 = vsyncpa [#allocation5], 0
    %8 = vsyncpa [#allocation8], 0
    %9 = vsyncpa [#allocation6], 0
    // Predicated region
    $region2: #{tpu_custom_call.1} parent=1 // pred_check
      _
    $region3: #{tpu_custom_call.1} parent=1 // pred_check_branch
      %11 = sbr.rel (0) target = $region5
    $region4: #{tpu_custom_call.1} parent=1 // pred_region
      %13 = vsyncadd [#allocation5], 0
      %s14 = sshll.u32 %s0, 4
      %s15 = int_to_ptr.hbm [resolvable:$true] %s14
      %s16 = sshll.u32 [#allocation4], 4
      %s17 = int_to_ptr.vmem [resolvable:$true] %s16
      %22 = dma.hbm_to_vmem [thread:$0]  %s15, 2048, %s17, [#allocation5], 128, 128, 8
    $region5: #{tpu_custom_call.1} parent=1 // pred_fallthru
      _
    // Predicated region
    $region6: #{tpu_custom_call.1} parent=1 // pred_check
      _
    $region7: #{tpu_custom_call.1} parent=1 // pred_check_branch
      %24 = sbr.rel (0) target = $region9
    $region8: #{tpu_custom_call.1} parent=1 // pred_region
      %26 = vsyncadd [#allocation8], 0
      %s27 = sshll.u32 %s1, 4
      %s28 = int_to_ptr.hbm [resolvable:$true] %s27
      %s29 = sshll.u32 [#allocation7], 4
      %s30 = int_to_ptr.vmem [resolvable:$true] %s29
      %35 = dma.hbm_to_vmem [thread:$0]  %s28, 2048, %s30, [#allocation8], 128, 128, 8
    $region9: #{tpu_custom_call.1} parent=1 // pred_fallthru
      _
    // Predicated region
    $region10: #{tpu_custom_call.1} parent=1 // pred_check
      _
    $region11: #{tpu_custom_call.1} parent=1 // pred_check_branch
      %37 = sbr.rel (0) target = $region13
    $region12: #{tpu_custom_call.1} parent=1 // pred_region
      %39 = dma.done [#allocation5], 2048
    $region13: #{tpu_custom_call.1} parent=1 // pred_fallthru
      _
    // Predicated region
    $region14: #{tpu_custom_call.1} parent=1 // pred_check
      _
    $region15: #{tpu_custom_call.1} parent=1 // pred_check_branch
      %41 = sbr.rel (0) target = $region17
    $region16: #{tpu_custom_call.1} parent=1 // pred_region
      %43 = dma.done [#allocation8], 2048
    $region17: #{tpu_custom_call.1} parent=1 // pred_fallthru
      _
    %v44 = vld [vmem:[#allocation4] sm:$0xff]
    %v45 = vld [vmem:[#allocation4 + $0x8] sm:$0xff]
    %v46 = vld [vmem:[#allocation4 + $0x10] sm:$0xff]
    %v47 = vld [vmem:[#allocation4 + $0x18] sm:$0xff]
    %v48 = vld [vmem:[#allocation4 + $0x20] sm:$0xff]
    %v49 = vld [vmem:[#allocation4 + $0x28] sm:$0xff]
    %v50 = vld [vmem:[#allocation4 + $0x30] sm:$0xff]
    %v51 = vld [vmem:[#allocation4 + $0x38] sm:$0xff]
    %v52 = vld [vmem:[#allocation4 + $0x40] sm:$0xff]
    %v53 = vld [vmem:[#allocation4 + $0x48] sm:$0xff]
    %v54 = vld [vmem:[#allocation4 + $0x50] sm:$0xff]
    %v55 = vld [vmem:[#allocation4 + $0x58] sm:$0xff]
    %v56 = vld [vmem:[#allocation4 + $0x60] sm:$0xff]
    %v57 = vld [vmem:[#allocation4 + $0x68] sm:$0xff]
    %v58 = vld [vmem:[#allocation4 + $0x70] sm:$0xff]
    %v59 = vld [vmem:[#allocation4 + $0x78] sm:$0xff]
    %v60 = vld [vmem:[#allocation7] sm:$0xff]
    %v61 = vld [vmem:[#allocation7 + $0x8] sm:$0xff]
    %v62 = vld [vmem:[#allocation7 + $0x10] sm:$0xff]
    %v63 = vld [vmem:[#allocation7 + $0x18] sm:$0xff]
    %v64 = vld [vmem:[#allocation7 + $0x20] sm:$0xff]
    %v65 = vld [vmem:[#allocation7 + $0x28] sm:$0xff]
    %v66 = vld [vmem:[#allocation7 + $0x30] sm:$0xff]
    %v67 = vld [vmem:[#allocation7 + $0x38] sm:$0xff]
    %v68 = vld [vmem:[#allocation7 + $0x40] sm:$0xff]
    %v69 = vld [vmem:[#allocation7 + $0x48] sm:$0xff]
    %v70 = vld [vmem:[#allocation7 + $0x50] sm:$0xff]
    %v71 = vld [vmem:[#allocation7 + $0x58] sm:$0xff]
    %v72 = vld [vmem:[#allocation7 + $0x60] sm:$0xff]
    %v73 = vld [vmem:[#allocation7 + $0x68] sm:$0xff]
    %v74 = vld [vmem:[#allocation7 + $0x70] sm:$0xff]
    %v75 = vld [vmem:[#allocation7 + $0x78] sm:$0xff]
    %76 = vmatpush.xpose.msra.mxu0 %v75
    %77 = vmatpush.xpose.msra.mxu0 %v74
    %78 = vmatpush.xpose.msra.mxu0 %v73
    %79 = vmatpush.xpose.msra.mxu0 %v72
    %80 = vmatpush.xpose.msra.mxu0 %v71
    %81 = vmatpush.xpose.msra.mxu0 %v70
    %82 = vmatpush.xpose.msra.mxu0 %v69
    %83 = vmatpush.xpose.msra.mxu0 %v68
    %84 = vmatpush.xpose.msra.mxu0 %v67
    %85 = vmatpush.xpose.msra.mxu0 %v66
    %86 = vmatpush.xpose.msra.mxu0 %v65
    %87 = vmatpush.xpose.msra.mxu0 %v64
    %88 = vmatpush.xpose.msra.mxu0 %v63
    %89 = vmatpush.xpose.msra.mxu0 %v62
    %90 = vmatpush.xpose.msra.mxu0 %v61
    %91 = vmatpush.xpose.msra.mxu0 %v60
    %92 = vmatmul.f32.gmra.mxu0 %v44
    %v93 = vpop.f32.mrf.mxu0
    %v94 = vadd.f32 0.0, %v93
    %95 = vmatmul.f32.gmra.mxu0 %v45
    %v96 = vpop.f32.mrf.mxu0
    %v97 = vadd.f32 0.0, %v96
    %98 = vmatmul.f32.gmra.mxu0 %v46
    %v99 = vpop.f32.mrf.mxu0
    %v100 = vadd.f32 0.0, %v99
    %101 = vmatmul.f32.gmra.mxu0 %v47
    %v102 = vpop.f32.mrf.mxu0
    %v103 = vadd.f32 0.0, %v102
    %104 = vmatmul.f32.gmra.mxu0 %v48
    %v105 = vpop.f32.mrf.mxu0
    %v106 = vadd.f32 0.0, %v105
    %107 = vmatmul.f32.gmra.mxu0 %v49
    %v108 = vpop.f32.mrf.mxu0
    %v109 = vadd.f32 0.0, %v108
    %110 = vmatmul.f32.gmra.mxu0 %v50
    %v111 = vpop.f32.mrf.mxu0
    %v112 = vadd.f32 0.0, %v111
    %113 = vmatmul.f32.gmra.mxu0 %v51
    %v114 = vpop.f32.mrf.mxu0
    %v115 = vadd.f32 0.0, %v114
    %116 = vmatmul.f32.gmra.mxu0 %v52
    %v117 = vpop.f32.mrf.mxu0
    %v118 = vadd.f32 0.0, %v117
    %119 = vmatmul.f32.gmra.mxu0 %v53
    %v120 = vpop.f32.mrf.mxu0
    %v121 = vadd.f32 0.0, %v120
    %122 = vmatmul.f32.gmra.mxu0 %v54
    %v123 = vpop.f32.mrf.mxu0
    %v124 = vadd.f32 0.0, %v123
    %125 = vmatmul.f32.gmra.mxu0 %v55
    %v126 = vpop.f32.mrf.mxu0
    %v127 = vadd.f32 0.0, %v126
    %128 = vmatmul.f32.gmra.mxu0 %v56
    %v129 = vpop.f32.mrf.mxu0
    %v130 = vadd.f32 0.0, %v129
    %131 = vmatmul.f32.gmra.mxu0 %v57
    %v132 = vpop.f32.mrf.mxu0
    %v133 = vadd.f32 0.0, %v132
    %134 = vmatmul.f32.gmra.mxu0 %v58
    %v135 = vpop.f32.mrf.mxu0
    %v136 = vadd.f32 0.0, %v135
    %137 = vmatmul.f32.gmra.mxu0 %v59
    %v138 = vpop.f32.mrf.mxu0
    %v139 = vadd.f32 0.0, %v138
    %140 = vdwg.mxu0
    %141 = vxpose.xlu0.b32.start [1/16] %v94, 128
    %142 = vxpose.xlu0.b32.cont [2/16] %v97, 128
    %143 = vxpose.xlu0.b32.cont [3/16] %v100, 128
    %144 = vxpose.xlu0.b32.cont [4/16] %v103, 128
    %145 = vxpose.xlu0.b32.cont [5/16] %v106, 128
    %146 = vxpose.xlu0.b32.cont [6/16] %v109, 128
    %147 = vxpose.xlu0.b32.cont [7/16] %v112, 128
    %148 = vxpose.xlu0.b32.cont [8/16] %v115, 128
    %149 = vxpose.xlu0.b32.cont [9/16] %v118, 128
    %150 = vxpose.xlu0.b32.cont [10/16] %v121, 128
    %151 = vxpose.xlu0.b32.cont [11/16] %v124, 128
    %152 = vxpose.xlu0.b32.cont [12/16] %v127, 128
    %153 = vxpose.xlu0.b32.cont [13/16] %v130, 128
    %154 = vxpose.xlu0.b32.cont [14/16] %v133, 128
    %155 = vxpose.xlu0.b32.cont [15/16] %v136, 128
    %156 = vxpose.xlu0.b32.end [16/16] %v139, 128
    %v157 = vpop.trf.xlu0
    %v158 = vpop.trf.xlu0
    %v159 = vpop.trf.xlu0
    %v160 = vpop.trf.xlu0
    %v161 = vpop.trf.xlu0
    %v162 = vpop.trf.xlu0
    %v163 = vpop.trf.xlu0
    %v164 = vpop.trf.xlu0
    %v165 = vpop.trf.xlu0
    %v166 = vpop.trf.xlu0
    %v167 = vpop.trf.xlu0
    %v168 = vpop.trf.xlu0
    %v169 = vpop.trf.xlu0
    %v170 = vpop.trf.xlu0
    %v171 = vpop.trf.xlu0
    %v172 = vpop.trf.xlu0
    %v173 = vlaneseq
    %v174 = vshrl.u32 %v173, 7
    %v175 = vadd.s32 %v174, 8
    %v176 = vadd.s32 %v174, 16
    %v177 = vadd.s32 %v174, 24
    %v178 = vadd.s32 %v174, 32
    %v179 = vadd.s32 %v174, 40
    %v180 = vadd.s32 %v174, 48
    %v181 = vadd.s32 %v174, 56
    %v182 = vadd.s32 %v174, 64
    %v183 = vadd.s32 %v174, 72
    %v184 = vadd.s32 %v174, 80
    %v185 = vadd.s32 %v174, 88
    %v186 = vadd.s32 %v174, 96
    %v187 = vadd.s32 %v174, 104
    %v188 = vadd.s32 %v174, 112
    %v189 = vadd.s32 %v174, 120
    %v190 = vlaneseq
    %v191 = vand.u32 %v190, 127
    %vm192 = vcmp.eq.s32.totalorder %v191, %v174
    %vm193 = vcmp.eq.s32.totalorder %v191, %v175
    %vm194 = vcmp.eq.s32.totalorder %v191, %v176
    %vm195 = vcmp.eq.s32.totalorder %v191, %v177
    %vm196 = vcmp.eq.s32.totalorder %v191, %v178
    %vm197 = vcmp.eq.s32.totalorder %v191, %v179
    %vm198 = vcmp.eq.s32.totalorder %v191, %v180
    %vm199 = vcmp.eq.s32.totalorder %v191, %v181
    %vm200 = vcmp.eq.s32.totalorder %v191, %v182
    %vm201 = vcmp.eq.s32.totalorder %v191, %v183
    %vm202 = vcmp.eq.s32.totalorder %v191, %v184
    %vm203 = vcmp.eq.s32.totalorder %v191, %v185
    %vm204 = vcmp.eq.s32.totalorder %v191, %v186
    %vm205 = vcmp.eq.s32.totalorder %v191, %v187
    %vm206 = vcmp.eq.s32.totalorder %v191, %v188
    %vm207 = vcmp.eq.s32.totalorder %v191, %v189
    %v208 = vsel %vm192, %v94, 0.0
    %v209 = vsel %vm193, %v97, 0.0
    %v210 = vsel %vm194, %v100, 0.0
    %v211 = vsel %vm195, %v103, 0.0
    %v212 = vsel %vm196, %v106, 0.0
    %v213 = vsel %vm197, %v109, 0.0
    %v214 = vsel %vm198, %v112, 0.0
    %v215 = vsel %vm199, %v115, 0.0
    %v216 = vsel %vm200, %v118, 0.0
    %v217 = vsel %vm201, %v121, 0.0
    %v218 = vsel %vm202, %v124, 0.0
    %v219 = vsel %vm203, %v127, 0.0
    %v220 = vsel %vm204, %v130, 0.0
    %v221 = vsel %vm205, %v133, 0.0
    %v222 = vsel %vm206, %v136, 0.0
    %v223 = vsel %vm207, %v139, 0.0
    %224 = vadd.xlane.f32.xlu0 %v208
    %v225 = vpop.xlane.xlu0 %224
    %226 = vadd.xlane.f32.xlu0 %v209
    %v227 = vpop.xlane.xlu0 %226
    %228 = vadd.xlane.f32.xlu0 %v210
    %v229 = vpop.xlane.xlu0 %228
    %230 = vadd.xlane.f32.xlu0 %v211
    %v231 = vpop.xlane.xlu0 %230
    %232 = vadd.xlane.f32.xlu0 %v212
    %v233 = vpop.xlane.xlu0 %232
    %234 = vadd.xlane.f32.xlu0 %v213
    %v235 = vpop.xlane.xlu0 %234
    %236 = vadd.xlane.f32.xlu0 %v214
    %v237 = vpop.xlane.xlu0 %236
    %238 = vadd.xlane.f32.xlu0 %v215
    %v239 = vpop.xlane.xlu0 %238
    %240 = vadd.xlane.f32.xlu0 %v216
    %v241 = vpop.xlane.xlu0 %240
    %242 = vadd.xlane.f32.xlu0 %v217
    %v243 = vpop.xlane.xlu0 %242
    %244 = vadd.xlane.f32.xlu0 %v218
    %v245 = vpop.xlane.xlu0 %244
    %246 = vadd.xlane.f32.xlu0 %v219
    %v247 = vpop.xlane.xlu0 %246
    %248 = vadd.xlane.f32.xlu0 %v220
    %v249 = vpop.xlane.xlu0 %248
    %250 = vadd.xlane.f32.xlu0 %v221
    %v251 = vpop.xlane.xlu0 %250
    %252 = vadd.xlane.f32.xlu0 %v222
    %v253 = vpop.xlane.xlu0 %252
    %254 = vadd.xlane.f32.xlu0 %v223
    %v255 = vpop.xlane.xlu0 %254
    %vm256 = vcmp.eq.f32.partialorder %v94, %v225
    %vm257 = vcmp.eq.f32.partialorder %v97, %v227
    %vm258 = vcmp.eq.f32.partialorder %v100, %v229
    %vm259 = vcmp.eq.f32.partialorder %v103, %v231
    %vm260 = vcmp.eq.f32.partialorder %v106, %v233
    %vm261 = vcmp.eq.f32.partialorder %v109, %v235
    %vm262 = vcmp.eq.f32.partialorder %v112, %v237
    %vm263 = vcmp.eq.f32.partialorder %v115, %v239
    %vm264 = vcmp.eq.f32.partialorder %v118, %v241
    %vm265 = vcmp.eq.f32.partialorder %v121, %v243
    %vm266 = vcmp.eq.f32.partialorder %v124, %v245
    %vm267 = vcmp.eq.f32.partialorder %v127, %v247
    %vm268 = vcmp.eq.f32.partialorder %v130, %v249
    %vm269 = vcmp.eq.f32.partialorder %v133, %v251
    %vm270 = vcmp.eq.f32.partialorder %v136, %v253
    %vm271 = vcmp.eq.f32.partialorder %v139, %v255
    %vm272 = vcmp.ge.s32.totalorder %v174, 8
    %vm273 = vcmp.ge.s32.totalorder %v175, 8
    %vm274 = vcmp.ge.s32.totalorder %v176, 8
    %vm275 = vcmp.ge.s32.totalorder %v177, 8
    %vm276 = vcmp.ge.s32.totalorder %v178, 8
    %vm277 = vcmp.ge.s32.totalorder %v179, 8
    %vm278 = vcmp.ge.s32.totalorder %v180, 8
    %vm279 = vcmp.ge.s32.totalorder %v181, 8
    %vm280 = vcmp.ge.s32.totalorder %v182, 8
    %vm281 = vcmp.ge.s32.totalorder %v183, 8
    %vm282 = vcmp.ge.s32.totalorder %v184, 8
    %vm283 = vcmp.ge.s32.totalorder %v185, 8
    %vm284 = vcmp.ge.s32.totalorder %v186, 8
    %vm285 = vcmp.ge.s32.totalorder %v187, 8
    %vm286 = vcmp.ge.s32.totalorder %v188, 8
    %vm287 = vcmp.ge.s32.totalorder %v189, 8
    %vm288 = vmor %vm256, %vm272
    %vm289 = vmor %vm257, %vm273
    %vm290 = vmor %vm258, %vm274
    %vm291 = vmor %vm259, %vm275
    %vm292 = vmor %vm260, %vm276
    %vm293 = vmor %vm261, %vm277
    %vm294 = vmor %vm262, %vm278
    %vm295 = vmor %vm263, %vm279
    %vm296 = vmor %vm264, %vm280
    %vm297 = vmor %vm265, %vm281
    %vm298 = vmor %vm266, %vm282
    %vm299 = vmor %vm267, %vm283
    %vm300 = vmor %vm268, %vm284
    %vm301 = vmor %vm269, %vm285
    %vm302 = vmor %vm270, %vm286
    %vm303 = vmor %vm271, %vm287
    %vm304 = vcmp.ge.s32.totalorder %v191, 8
    %vm305 = vmor %vm288, %vm304
    %vm306 = vmor %vm289, %vm304
    %vm307 = vmor %vm290, %vm304
    %vm308 = vmor %vm291, %vm304
    %vm309 = vmor %vm292, %vm304
    %vm310 = vmor %vm293, %vm304
    %vm311 = vmor %vm294, %vm304
    %vm312 = vmor %vm295, %vm304
    %vm313 = vmor %vm296, %vm304
    %vm314 = vmor %vm297, %vm304
    %vm315 = vmor %vm298, %vm304
    %vm316 = vmor %vm299, %vm304
    %vm317 = vmor %vm300, %vm304
    %vm318 = vmor %vm301, %vm304
    %vm319 = vmor %vm302, %vm304
    %vm320 = vmor %vm303, %vm304
    %v321 = vadd.f32 %v94, 1.0
    %v322 = vadd.f32 %v97, 1.0
    %v323 = vadd.f32 %v100, 1.0
    %v324 = vadd.f32 %v103, 1.0
    %v325 = vadd.f32 %v106, 1.0
    %v326 = vadd.f32 %v109, 1.0
    %v327 = vadd.f32 %v112, 1.0
    %v328 = vadd.f32 %v115, 1.0
    %v329 = vadd.f32 %v118, 1.0
    %v330 = vadd.f32 %v121, 1.0
    %v331 = vadd.f32 %v124, 1.0
    %v332 = vadd.f32 %v127, 1.0
    %v333 = vadd.f32 %v130, 1.0
    %v334 = vadd.f32 %v133, 1.0
    %v335 = vadd.f32 %v136, 1.0
    %v336 = vadd.f32 %v139, 1.0
    %v337 = vsub.f32 %v321, %v225
    %v338 = vsub.f32 %v322, %v227
    %v339 = vsub.f32 %v323, %v229
    %v340 = vsub.f32 %v324, %v231
    %v341 = vsub.f32 %v325, %v233
    %v342 = vsub.f32 %v326, %v235
    %v343 = vsub.f32 %v327, %v237
    %v344 = vsub.f32 %v328, %v239
    %v345 = vsub.f32 %v329, %v241
    %v346 = vsub.f32 %v330, %v243
    %v347 = vsub.f32 %v331, %v245
    %v348 = vsub.f32 %v332, %v247
    %v349 = vsub.f32 %v333, %v249
    %v350 = vsub.f32 %v334, %v251
    %v351 = vsub.f32 %v335, %v253
    %v352 = vsub.f32 %v336, %v255
    %v353 = vmax.f32 %v337, 0.0
    %v354 = vmax.f32 %v338, 0.0
    %v355 = vmax.f32 %v339, 0.0
    %v356 = vmax.f32 %v340, 0.0
    %v357 = vmax.f32 %v341, 0.0
    %v358 = vmax.f32 %v342, 0.0
    %v359 = vmax.f32 %v343, 0.0
    %v360 = vmax.f32 %v344, 0.0
    %v361 = vmax.f32 %v345, 0.0
    %v362 = vmax.f32 %v346, 0.0
    %v363 = vmax.f32 %v347, 0.0
    %v364 = vmax.f32 %v348, 0.0
    %v365 = vmax.f32 %v349, 0.0
    %v366 = vmax.f32 %v350, 0.0
    %v367 = vmax.f32 %v351, 0.0
    %v368 = vmax.f32 %v352, 0.0
    %v369 = vsel %vm305, 0.0, %v353
    %v370 = vsel %vm306, 0.0, %v354
    %v371 = vsel %vm307, 0.0, %v355
    %v372 = vsel %vm308, 0.0, %v356
    %v373 = vsel %vm309, 0.0, %v357
    %v374 = vsel %vm310, 0.0, %v358
    %v375 = vsel %vm311, 0.0, %v359
    %v376 = vsel %vm312, 0.0, %v360
    %v377 = vsel %vm313, 0.0, %v361
    %v378 = vsel %vm314, 0.0, %v362
    %v379 = vsel %vm315, 0.0, %v363
    %v380 = vsel %vm316, 0.0, %v364
    %v381 = vsel %vm317, 0.0, %v365
    %v382 = vsel %vm318, 0.0, %v366
    %v383 = vsel %vm319, 0.0, %v367
    %v384 = vsel %vm320, 0.0, %v368
    %v385 = vadd.f32 %v157, 1.0
    %v386 = vadd.f32 %v158, 1.0
    %v387 = vadd.f32 %v159, 1.0
    %v388 = vadd.f32 %v160, 1.0
    %v389 = vadd.f32 %v161, 1.0
    %v390 = vadd.f32 %v162, 1.0
    %v391 = vadd.f32 %v163, 1.0
    %v392 = vadd.f32 %v164, 1.0
    %v393 = vadd.f32 %v165, 1.0
    %v394 = vadd.f32 %v166, 1.0
    %v395 = vadd.f32 %v167, 1.0
    %v396 = vadd.f32 %v168, 1.0
    %v397 = vadd.f32 %v169, 1.0
    %v398 = vadd.f32 %v170, 1.0
    %v399 = vadd.f32 %v171, 1.0
    %v400 = vadd.f32 %v172, 1.0
    %v401 = vsub.f32 %v385, %v225
    %v402 = vsub.f32 %v386, %v227
    %v403 = vsub.f32 %v387, %v229
    %v404 = vsub.f32 %v388, %v231
    %v405 = vsub.f32 %v389, %v233
    %v406 = vsub.f32 %v390, %v235
    %v407 = vsub.f32 %v391, %v237
    %v408 = vsub.f32 %v392, %v239
    %v409 = vsub.f32 %v393, %v241
    %v410 = vsub.f32 %v394, %v243
    %v411 = vsub.f32 %v395, %v245
    %v412 = vsub.f32 %v396, %v247
    %v413 = vsub.f32 %v397, %v249
    %v414 = vsub.f32 %v398, %v251
    %v415 = vsub.f32 %v399, %v253
    %v416 = vsub.f32 %v400, %v255
    %v417 = vmax.f32 %v401, 0.0
    %v418 = vmax.f32 %v402, 0.0
    %v419 = vmax.f32 %v403, 0.0
    %v420 = vmax.f32 %v404, 0.0
    %v421 = vmax.f32 %v405, 0.0
    %v422 = vmax.f32 %v406, 0.0
    %v423 = vmax.f32 %v407, 0.0
    %v424 = vmax.f32 %v408, 0.0
    %v425 = vmax.f32 %v409, 0.0
    %v426 = vmax.f32 %v410, 0.0
    %v427 = vmax.f32 %v411, 0.0
    %v428 = vmax.f32 %v412, 0.0
    %v429 = vmax.f32 %v413, 0.0
    %v430 = vmax.f32 %v414, 0.0
    %v431 = vmax.f32 %v415, 0.0
    %v432 = vmax.f32 %v416, 0.0
    %v433 = vsel %vm305, 0.0, %v417
    %v434 = vsel %vm306, 0.0, %v418
    %v435 = vsel %vm307, 0.0, %v419
    %v436 = vsel %vm308, 0.0, %v420
    %v437 = vsel %vm309, 0.0, %v421
    %v438 = vsel %vm310, 0.0, %v422
    %v439 = vsel %vm311, 0.0, %v423
    %v440 = vsel %vm312, 0.0, %v424
    %v441 = vsel %vm313, 0.0, %v425
    %v442 = vsel %vm314, 0.0, %v426
    %v443 = vsel %vm315, 0.0, %v427
    %v444 = vsel %vm316, 0.0, %v428
    %v445 = vsel %vm317, 0.0, %v429
    %v446 = vsel %vm318, 0.0, %v430
    %v447 = vsel %vm319, 0.0, %v431
    %v448 = vsel %vm320, 0.0, %v432
    %v449 = vadd.f32 %v369, %v370
    %v450 = vadd.f32 %v449, %v371
    %v451 = vadd.f32 %v450, %v372
    %v452 = vadd.f32 %v451, %v373
    %v453 = vadd.f32 %v452, %v374
    %v454 = vadd.f32 %v453, %v375
    %v455 = vadd.f32 %v454, %v376
    %v456 = vadd.f32 %v455, %v377
    %v457 = vadd.f32 %v456, %v378
    %v458 = vadd.f32 %v457, %v379
    %v459 = vadd.f32 %v458, %v380
    %v460 = vadd.f32 %v459, %v381
    %v461 = vadd.f32 %v460, %v382
    %v462 = vadd.f32 %v461, %v383
    %v463 = vadd.f32 %v462, %v384
    %464 = vadd.xlane.f32.xlu0 %v463
    %v465 = vpop.xlane.xlu0 %464
    %v466 = vrot.slane %v465, 4
    %v467 = vadd.f32 %v465, %v466
    %v468 = vrot.slane %v467, 2
    %v469 = vadd.f32 %v467, %v468
    %v470 = vrot.slane %v469, 1
    %v471 = vadd.f32 %v469, %v470
    %s472 = vtos %v471
    %v473 = vadd.f32 %v433, %v434
    %v474 = vadd.f32 %v473, %v435
    %v475 = vadd.f32 %v474, %v436
    %v476 = vadd.f32 %v475, %v437
    %v477 = vadd.f32 %v476, %v438
    %v478 = vadd.f32 %v477, %v439
    %v479 = vadd.f32 %v478, %v440
    %v480 = vadd.f32 %v479, %v441
    %v481 = vadd.f32 %v480, %v442
    %v482 = vadd.f32 %v481, %v443
    %v483 = vadd.f32 %v482, %v444
    %v484 = vadd.f32 %v483, %v445
    %v485 = vadd.f32 %v484, %v446
    %v486 = vadd.f32 %v485, %v447
    %v487 = vadd.f32 %v486, %v448
    %488 = vadd.xlane.f32.xlu0 %v487
    %v489 = vpop.xlane.xlu0 %488
    %v490 = vrot.slane %v489, 4
    %v491 = vadd.f32 %v489, %v490
    %v492 = vrot.slane %v491, 2
    %v493 = vadd.f32 %v491, %v492
    %v494 = vrot.slane %v493, 1
    %v495 = vadd.f32 %v493, %v494
    %s496 = vtos %v495
    %s497 = sadd.f32 %s472, %s496
    %p498 = scmp.eq.s32.totalorder 0, 0
    // Predicated region
    $region18: #{tpu_custom_call.1} parent=1 // pred_check
      %p499 = pneg %p498
    $region19: #{tpu_custom_call.1} parent=1 // pred_check_branch
      %501 = sbr.rel (%p499) target = $region21
    $region20: #{tpu_custom_call.1} parent=1 // pred_region
      %vm502 = vcmask 0
      %503 = vst.msk [vmem:[#allocation9] sm:$0x1] %vm502, 0.0
    $region21: #{tpu_custom_call.1} parent=1 // pred_fallthru
      _
    %v504 = vld [vmem:[#allocation9] sm:$0x1]
    %v505 = vstv %s497
    %v506 = vadd.f32 %v504, %v505
    %vm507 = vcmask 0
    %508 = vst.msk [vmem:[#allocation9] sm:$0x1] %vm507, %v506
    // Predicated region
    $region22: #{tpu_custom_call.1} parent=1 // pred_check
      _
    $region23: #{tpu_custom_call.1} parent=1 // pred_check_branch
      %510 = sbr.rel (0) target = $region25
    $region24: #{tpu_custom_call.1} parent=1 // pred_region
      %512 = vsyncadd [#allocation6], 0
      %s514 = sshll.u32 [#allocation9], 4
      %s515 = int_to_ptr.vmem [resolvable:$true] %s514
      %s516 = sshll.u32 %s2, 4
      %s517 = int_to_ptr.hbm [resolvable:$true] %s516
      %519 = dma.vmem_to_hbm [thread:$0]  %s515, 16, %s517, [#allocation6]
    $region25: #{tpu_custom_call.1} parent=1 // pred_fallthru
      _
    // Predicated region
    $region26: #{tpu_custom_call.1} parent=1 // pred_check
      _
    $region27: #{tpu_custom_call.1} parent=1 // pred_check_branch
      %521 = sbr.rel (0) target = $region29
    $region28: #{tpu_custom_call.1} parent=1 // pred_region
      %523 = dma.done [#allocation6], 16
    $region29: #{tpu_custom_call.1} parent=1 // pred_fallthru
      _
    %524 = vsyncpa [#allocation5], 1
    %525 = vsyncpa [#allocation8], 1
    %526 = vsyncpa [#allocation6], 1

</llo_original>
